<compile_context>
chip_gen: v6e
topology: v6e:2x2x1
jax: 0.10.0
libtpu: 0.0.40
codegen_flags: <defaults>
</compile_context>

<pallas_src>
import functools

import jax
import jax.numpy as jnp
from jax.experimental import pallas as pl
from jax.experimental.pallas import tpu as pltpu


def _round_up(x: int, m: int) -> int:
    return ((x + m - 1) // m) * m


def _decoder_kernel(gid_ref, feat_ref, gf_ref, b1_ref, b2_ref,
                    w1a_hbm, w1b_hbm, w2_hbm,
                    out_ref,
                    acc_ref, w1a_v, w1b_v, w2_v, sem,
                    *, g_chunk: int, n_chunks: int, out_dim: int):
    n = pl.program_id(0)          # node-tile index ("arbitrary" reduction axis)

    # --- first node tile: zero the pooled accumulator, kick off weight DMAs ---
    @pl.when(n == 0)
    def _():
        acc_ref[...] = jnp.zeros_like(acc_ref)
        # Weights are only needed in the epilogue: single-buffered VMEM scratch,
        # DMA issued once here and fully hidden behind the node streaming.
        pltpu.make_async_copy(w1a_hbm, w1a_v, sem.at[0]).start()
        pltpu.make_async_copy(w1b_hbm, w1b_v, sem.at[1]).start()
        pltpu.make_async_copy(w2_hbm, w2_v, sem.at[2]).start()

    # --- segment-sum for this node tile (membership mask built in-kernel) ---
    gid = gid_ref[...]                                # [1, TN] int32 (-1 for padding)
    feat = feat_ref[...]                              # [TN, F_pad] bf16
    if n_chunks == 1:
        row = jax.lax.broadcasted_iota(jnp.int32, (g_chunk, 1), 0)
        mask = (row == gid).astype(jnp.bfloat16)      # [G_chunk, TN], exact 0/1
        acc_ref[...] += jnp.dot(mask, feat, preferred_element_type=jnp.float32)
    else:
        for c in range(n_chunks):                     # static chunk loop over graph rows
            row = jax.lax.broadcasted_iota(jnp.int32, (g_chunk, 1), 0) + c * g_chunk
            mask = (row == gid).astype(jnp.bfloat16)
            acc_ref[c * g_chunk:(c + 1) * g_chunk, :] += jnp.dot(
                mask, feat, preferred_element_type=jnp.float32)

    # --- last node tile: MLP + log_softmax epilogue ---
    @pl.when(n == pl.num_programs(0) - 1)
    def _():
        pltpu.make_async_copy(w1a_hbm, w1a_v, sem.at[0]).wait()
        pltpu.make_async_copy(w1b_hbm, w1b_v, sem.at[1]).wait()
        pltpu.make_async_copy(w2_hbm, w2_v, sem.at[2]).wait()

        pooled = acc_ref[...]                         # [G_pad, F_pad] f32

        # fc1 on the (virtually) concatenated [pooled | gf] input
        h = (jnp.dot(pooled.astype(jnp.bfloat16), w1a_v[...],
                     preferred_element_type=jnp.float32)
             + jnp.dot(gf_ref[...], w1b_v[...],
                       preferred_element_type=jnp.float32)
             + b1_ref[...])                           # [G_pad, H_pad] f32

        # activation: relu (f32 epilogue)
        h = jnp.maximum(h, 0.0)

        # dropout: eval mode -> identity
        # TODO(synk): training-mode dropout with pltpu.prng_random_bits if needed.

        # fc2
        logits = (jnp.dot(h.astype(jnp.bfloat16), w2_v[...],
                          preferred_element_type=jnp.float32)
                  + b2_ref[...])                      # [G_pad, O_pad] f32

        # mask padded output columns so they do not perturb the log-sum-exp
        col = jax.lax.broadcasted_iota(jnp.int32, logits.shape, 1)
        logits = jnp.where(col < out_dim, logits, -1e30)

        # log_softmax over the last dim
        m = jnp.max(logits, axis=-1, keepdims=True)
        shifted = logits - m
        lse = jnp.log(jnp.sum(jnp.exp(shifted), axis=-1, keepdims=True))
        out_ref[...] = shifted - lse


def sum_pool_mlp_decoder(node_feats, graph_ids, num_graphs, gf,
                         w1, b1, w2, b2, *,
                         node_tile: int | None = None,
                         node_tile_bytes: int = 2 * 1024 * 1024):
    """node_feats: [N, F] f32, graph_ids: [N] int32, gf: [G, GF] f32,
    w1: [F+GF, H], b1: [H], w2: [H, O], b2: [O]."""
    N, F = node_feats.shape
    G = int(num_graphs)
    GF = gf.shape[1]
    H = w1.shape[1]
    O = w2.shape[1]

    # lane-dense padding (last dims -> multiples of 128)
    F_pad = _round_up(F, 128)
    GF_pad = _round_up(GF, 128)
    H_pad = _round_up(H, 128)
    O_pad = _round_up(O, 128)

    # graph rows: chunk the mask-matmul M dim at 256 (fills the v6e/v7x MXU)
    G_base = _round_up(max(G, 8), 8)
    G_chunk = min(G_base, 256)
    G_pad = _round_up(G_base, G_chunk)
    n_chunks = G_pad // G_chunk

    # node tile: aim for ~node_tile_bytes of streamed bf16 features per grid step
    if node_tile is None:
        tn_target = max(128, min(8192, (node_tile_bytes // (F_pad * 2)) // 128 * 128))
    else:
        tn_target = max(128, _round_up(node_tile, 128))
    TN = min(tn_target, _round_up(N, 128))
    N_pad = _round_up(N, TN)

    # --- inputs / parameters (bf16 MXU operands, f32 biases) ---
    # Only pad the feature matrix when its shape is not already tile-aligned
    # (avoids a second full HBM pass over the largest input).
    feat_bf = node_feats.astype(jnp.bfloat16)
    if (N_pad, F_pad) != (N, F):
        feat_bf = jnp.pad(feat_bf, ((0, N_pad - N), (0, F_pad - F)))
    gid_p = jnp.full((1, N_pad), -1, jnp.int32)            # -1: matches no graph
    gid_p = gid_p.at[0, :N].set(graph_ids.astype(jnp.int32))
    gf_p = jnp.zeros((G_pad, GF_pad), jnp.bfloat16)
    gf_p = gf_p.at[:G, :GF].set(gf.astype(jnp.bfloat16))
    w1a_p = jnp.zeros((F_pad, H_pad), jnp.bfloat16)
    w1a_p = w1a_p.at[:F, :H].set(w1[:F, :].astype(jnp.bfloat16))
    w1b_p = jnp.zeros((GF_pad, H_pad), jnp.bfloat16)
    w1b_p = w1b_p.at[:GF, :H].set(w1[F:, :].astype(jnp.bfloat16))
    b1_p = jnp.zeros((1, H_pad), jnp.float32)
    b1_p = b1_p.at[0, :H].set(b1.reshape(-1).astype(jnp.float32))
    w2_p = jnp.zeros((H_pad, O_pad), jnp.bfloat16)
    w2_p = w2_p.at[:H, :O].set(w2.astype(jnp.bfloat16))
    b2_p = jnp.zeros((1, O_pad), jnp.float32)
    b2_p = b2_p.at[0, :O].set(b2.reshape(-1).astype(jnp.float32))

    grid = (N_pad // TN,)
    kernel = functools.partial(_decoder_kernel,
                               g_chunk=G_chunk, n_chunks=n_chunks, out_dim=O)

    # VMEM budget (explicit accounting; stays well under v7x's 64 MiB)
    vmem_bytes = (
        2 * TN * F_pad * 2                                   # feat double buffer (bf16)
        + 2 * TN * 4                                         # graph-id double buffer
        + G_pad * F_pad * 4                                  # pooled f32 accumulator
        + (F_pad * H_pad + GF_pad * H_pad + H_pad * O_pad) * 2   # single-buffered weights
        + 2 * (G_pad * GF_pad * 2 + H_pad * 4 + O_pad * 4)   # gf / bias buffers
        + 2 * G_pad * O_pad * 4                              # output buffer
        + G_chunk * TN * 4                                   # in-flight membership mask
        + G_pad * (H_pad + O_pad) * 4                        # epilogue activations
    )
    vmem_limit = int(min(max(2 * vmem_bytes, 32 * 1024 * 1024), 48 * 1024 * 1024))

    # advisory cost estimate so XLA schedules producers/consumers around the kernel
    flops = (2 * G_pad * N_pad * F_pad
             + 2 * G_pad * (F_pad + GF_pad) * H_pad
             + 2 * G_pad * H_pad * O_pad)
    bytes_accessed = (N_pad * F_pad * 2 + N_pad * 4
                      + (F_pad * H_pad + GF_pad * H_pad + H_pad * O_pad) * 2
                      + G_pad * (GF_pad * 2 + O_pad * 4)
                      + (H_pad + O_pad) * 4)
    cost = pl.CostEstimate(flops=int(flops),
                           transcendentals=int(G_pad * O_pad + G_pad),
                           bytes_accessed=int(bytes_accessed))

    out_padded = pl.pallas_call(
        kernel,
        out_shape=jax.ShapeDtypeStruct((G_pad, O_pad), jnp.float32),
        grid_spec=pltpu.PrefetchScalarGridSpec(
            num_scalar_prefetch=0,
            grid=grid,
            in_specs=[
                pl.BlockSpec((1, TN), lambda n: (0, n)),          # graph_ids row
                pl.BlockSpec((TN, F_pad), lambda n: (n, 0)),      # node features (streamed once)
                pl.BlockSpec((G_pad, GF_pad), lambda n: (0, 0)),  # graph features
                pl.BlockSpec((1, H_pad), lambda n: (0, 0)),       # b1
                pl.BlockSpec((1, O_pad), lambda n: (0, 0)),       # b2
                pl.BlockSpec(memory_space=pl.ANY),                # W1a (HBM, DMA'd once)
                pl.BlockSpec(memory_space=pl.ANY),                # W1b (HBM, DMA'd once)
                pl.BlockSpec(memory_space=pl.ANY),                # W2  (HBM, DMA'd once)
            ],
            out_specs=pl.BlockSpec((G_pad, O_pad), lambda n: (0, 0)),
            scratch_shapes=[
                pltpu.VMEM((G_pad, F_pad), jnp.float32),          # pooled accumulator
                pltpu.VMEM((F_pad, H_pad), jnp.bfloat16),         # W1a (single-buffered)
                pltpu.VMEM((GF_pad, H_pad), jnp.bfloat16),        # W1b (single-buffered)
                pltpu.VMEM((H_pad, O_pad), jnp.bfloat16),         # W2  (single-buffered)
                pltpu.SemaphoreType.DMA((3,)),                    # weight-DMA semaphores
            ],
        ),
        compiler_params=pltpu.CompilerParams(
            dimension_semantics=("arbitrary",),
            vmem_limit_bytes=vmem_limit,
        ),
        cost_estimate=cost,
    )(gid_p, feat_bf, gf_p, b1_p, b2_p, w1a_p, w1b_p, w2_p)

    return out_padded[:G, :O]


if __name__ == "__main__":
    # module hyper-params (small, consistent with the forward pass)
    num_nodes = 16
    final_dim = 16
    num_graph_features = 4
    hidden_dim = 32
    output_dim = 8
    num_graphs = 2

    key = jax.random.PRNGKey(0)
    k_feat, k_gf, k_w1, k_b1, k_w2, k_b2 = jax.random.split(key, 6)

    # inputs: last element of `features` + graph assignment + graph-level features
    node_feats = jax.random.normal(k_feat, (num_nodes, final_dim), jnp.float32)
    graph_ids = jnp.repeat(jnp.arange(num_graphs, dtype=jnp.int32),
                           num_nodes // num_graphs)                # nodes 0-7 -> g0, 8-15 -> g1
    gf = jax.random.normal(k_gf, (num_graphs, num_graph_features), jnp.float32)

    # deterministic parameter init (torch.nn.Linear-like uniform)
    in1 = final_dim + num_graph_features
    lim1 = 1.0 / jnp.sqrt(jnp.float32(in1))
    w1 = jax.random.uniform(k_w1, (in1, hidden_dim), jnp.float32, -lim1, lim1)
    b1 = jax.random.uniform(k_b1, (hidden_dim,), jnp.float32, -lim1, lim1)

    lim2 = 1.0 / jnp.sqrt(jnp.float32(hidden_dim))
    w2 = jax.random.uniform(k_w2, (hidden_dim, output_dim), jnp.float32, -lim2, lim2)
    b2 = jax.random.uniform(k_b2, (output_dim,), jnp.float32, -lim2, lim2)

    out = sum_pool_mlp_decoder(node_feats, graph_ids, num_graphs, gf,
                               w1, b1, w2, b2)
    out = jax.block_until_ready(out)

    # sanity: reference in plain JAX (full f32)
    pooled_ref = jax.ops.segment_sum(node_feats, graph_ids, num_graphs)
    x_ref = jnp.concatenate([pooled_ref, gf], axis=-1)
    h_ref = jnp.maximum(x_ref @ w1 + b1, 0.0)
    logits_ref = h_ref @ w2 + b2
    ref = jax.nn.log_softmax(logits_ref, axis=-1)
    # bf16 MXU operands (f32 accumulation) -> loosened tolerance vs f32 reference
    assert out.shape == ref.shape, "shape mismatch vs reference"
    assert jnp.allclose(out, ref, atol=5e-2, rtol=5e-2), "mismatch vs reference"

    print("KERNEL_OK")
</pallas_src>

<mosaic_0001>
module attributes {stable_mosaic.version = 11 : i64} {
  func.func @_decoder_kernel(%arg0: i32, %arg1: memref<1x128xi32, #tpu.memory_space<vmem>>, %arg2: memref<128x128xbf16, #tpu.memory_space<vmem>>, %arg3: memref<8x128xbf16, #tpu.memory_space<vmem>>, %arg4: memref<1x128xf32, #tpu.memory_space<vmem>>, %arg5: memref<1x128xf32, #tpu.memory_space<vmem>>, %arg6: memref<128x128xbf16, #tpu.memory_space<any>>, %arg7: memref<128x128xbf16, #tpu.memory_space<any>>, %arg8: memref<128x128xbf16, #tpu.memory_space<any>>, %arg9: memref<8x128xf32, #tpu.memory_space<vmem>>, %arg10: memref<8x128xf32, #tpu.memory_space<vmem>>, %arg11: memref<128x128xbf16, #tpu.memory_space<vmem>>, %arg12: memref<128x128xbf16, #tpu.memory_space<vmem>>, %arg13: memref<128x128xbf16, #tpu.memory_space<vmem>>, %arg14: memref<3x!tpu.dma_semaphore, #tpu.memory_space<semaphore_mem>>) attributes {dimension_semantics = [#tpu.dimension_semantics<arbitrary>], iteration_bounds = array<i64: 1>, scalar_prefetch = 0 : i64, scratch_operands = 5 : i64, tpu.core_type = #tpu.core_type<tc>, window_params = [{transform_indices = @transform_0, window_bounds = array<i64: 1, 128>}, {transform_indices = @transform_1, window_bounds = array<i64: 128, 128>}, {pipeline_mode = #tpu.pipeline_mode<synchronous>, transform_indices = @transform_2, window_bounds = array<i64: 8, 128>}, {pipeline_mode = #tpu.pipeline_mode<synchronous>, transform_indices = @transform_3, window_bounds = array<i64: 1, 128>}, {pipeline_mode = #tpu.pipeline_mode<synchronous>, transform_indices = @transform_4, window_bounds = array<i64: 1, 128>}, {}, {}, {}, {pipeline_mode = #tpu.pipeline_mode<synchronous>, transform_indices = @transform_8, window_bounds = array<i64: 8, 128>}]} {
    %c0_i32 = arith.constant 0 : i32
    %0 = arith.cmpi eq, %arg0, %c0_i32 : i32
    %1 = arith.extui %0 : i1 to i32
    %c0_i32_0 = arith.constant 0 : i32
    %2 = arith.cmpi ne, %1, %c0_i32_0 : i32
    scf.if %2 {
      %cst_10 = arith.constant 0.000000e+00 : f32
      %19 = vector.broadcast %cst_10 : f32 to vector<8x128xf32>
      %c0_11 = arith.constant 0 : index
      %c0_12 = arith.constant 0 : index
      %20 = vector.load %arg10[%c0_11, %c0_12] : memref<8x128xf32, #tpu.memory_space<vmem>>, vector<8x128xf32>
      tpu.vector_store %arg10[%c0_11, %c0_12], %19 {strides = array<i32>} : memref<8x128xf32, #tpu.memory_space<vmem>>, vector<8x128xf32>,
      %c0_i32_13 = arith.constant 0 : i32
      %21 = tpu.memref_slice %arg14[%c0_i32_13] : memref<3x!tpu.dma_semaphore, #tpu.memory_space<semaphore_mem>> -> memref<1x!tpu.dma_semaphore, #tpu.memory_space<semaphore_mem>>
      %22 = tpu.memref_squeeze %21 : memref<1x!tpu.dma_semaphore, #tpu.memory_space<semaphore_mem>> -> memref<!tpu.dma_semaphore, #tpu.memory_space<semaphore_mem>>
      tpu.enqueue_dma source(%arg6 : memref<128x128xbf16, #tpu.memory_space<any>>) target(%arg11 : memref<128x128xbf16, #tpu.memory_space<vmem>>) target_semaphore(%22 : memref<!tpu.dma_semaphore, #tpu.memory_space<semaphore_mem>>)
      %c1_i32 = arith.constant 1 : i32
      %23 = tpu.memref_slice %arg14[%c1_i32] : memref<3x!tpu.dma_semaphore, #tpu.memory_space<semaphore_mem>> -> memref<1x!tpu.dma_semaphore, #tpu.memory_space<semaphore_mem>>
      %24 = tpu.memref_squeeze %23 : memref<1x!tpu.dma_semaphore, #tpu.memory_space<semaphore_mem>> -> memref<!tpu.dma_semaphore, #tpu.memory_space<semaphore_mem>>
      tpu.enqueue_dma source(%arg7 : memref<128x128xbf16, #tpu.memory_space<any>>) target(%arg12 : memref<128x128xbf16, #tpu.memory_space<vmem>>) target_semaphore(%24 : memref<!tpu.dma_semaphore, #tpu.memory_space<semaphore_mem>>)
      %c2_i32 = arith.constant 2 : i32
      %25 = tpu.memref_slice %arg14[%c2_i32] : memref<3x!tpu.dma_semaphore, #tpu.memory_space<semaphore_mem>> -> memref<1x!tpu.dma_semaphore, #tpu.memory_space<semaphore_mem>>
      %26 = tpu.memref_squeeze %25 : memref<1x!tpu.dma_semaphore, #tpu.memory_space<semaphore_mem>> -> memref<!tpu.dma_semaphore, #tpu.memory_space<semaphore_mem>>
      tpu.enqueue_dma source(%arg8 : memref<128x128xbf16, #tpu.memory_space<any>>) target(%arg13 : memref<128x128xbf16, #tpu.memory_space<vmem>>) target_semaphore(%26 : memref<!tpu.dma_semaphore, #tpu.memory_space<semaphore_mem>>)
    } else {
    }
    %c0 = arith.constant 0 : index
    %c0_1 = arith.constant 0 : index
    %3 = vector.load %arg1[%c0, %c0_1] : memref<1x128xi32, #tpu.memory_space<vmem>>, vector<1x128xi32>
    %c0_2 = arith.constant 0 : index
    %c0_3 = arith.constant 0 : index
    %4 = vector.load %arg2[%c0_2, %c0_3] : memref<128x128xbf16, #tpu.memory_space<vmem>>, vector<128x128xbf16>
    %5 = tpu.iota {dimensions = array<i32: 0>} : vector<8x1xi32>
    %6 = vector.broadcast %5 : vector<8x1xi32> to vector<8x128xi32>
    %7 = vector.broadcast %3 : vector<1x128xi32> to vector<8x128xi32>
    %8 = arith.cmpi eq, %6, %7 : vector<8x128xi32>
    %9 = arith.extui %8 : vector<8x128xi1> to vector<8x128xi32>
    %10 = arith.sitofp %9 : vector<8x128xi32> to vector<8x128xf32>
    %11 = arith.truncf %10 : vector<8x128xf32> to vector<8x128xbf16>
    %c0_4 = arith.constant 0 : index
    %c0_5 = arith.constant 0 : index
    %12 = vector.load %arg10[%c0_4, %c0_5] : memref<8x128xf32, #tpu.memory_space<vmem>>, vector<8x128xf32>
    %cst = arith.constant dense<0.000000e+00> : vector<8x128xf32>
    %13 = tpu.matmul %11, %4, %cst {dimension_numbers = #tpu.dot_dimension_numbers<[1], [0], [0], [1], [0, 0, 1, 1], [], []>} : vector<8x128xbf16>, vector<128x128xbf16>, vector<8x128xf32> -> vector<8x128xf32>
    %14 = arith.addf %12, %13 : vector<8x128xf32>
    %c0_6 = arith.constant 0 : index
    %c0_7 = arith.constant 0 : index
    %15 = vector.load %arg10[%c0_6, %c0_7] : memref<8x128xf32, #tpu.memory_space<vmem>>, vector<8x128xf32>
    tpu.vector_store %arg10[%c0_6, %c0_7], %14 {strides = array<i32>} : memref<8x128xf32, #tpu.memory_space<vmem>>, vector<8x128xf32>,
    %c0_i32_8 = arith.constant 0 : i32
    %16 = arith.cmpi eq, %arg0, %c0_i32_8 : i32
    %17 = arith.extui %16 : i1 to i32
    %c0_i32_9 = arith.constant 0 : i32
    %18 = arith.cmpi ne, %17, %c0_i32_9 : i32
    scf.if %18 {
      %c0_i32_10 = arith.constant 0 : i32
      %19 = tpu.memref_slice %arg14[%c0_i32_10] : memref<3x!tpu.dma_semaphore, #tpu.memory_space<semaphore_mem>> -> memref<1x!tpu.dma_semaphore, #tpu.memory_space<semaphore_mem>>
      %20 = tpu.memref_squeeze %19 : memref<1x!tpu.dma_semaphore, #tpu.memory_space<semaphore_mem>> -> memref<!tpu.dma_semaphore, #tpu.memory_space<semaphore_mem>>
      tpu.wait_dma2 semaphore(%20 : memref<!tpu.dma_semaphore, #tpu.memory_space<semaphore_mem>>) src(%arg6 : memref<128x128xbf16, #tpu.memory_space<any>>) dst(%arg11 : memref<128x128xbf16, #tpu.memory_space<vmem>>)
      %c1_i32 = arith.constant 1 : i32
      %21 = tpu.memref_slice %arg14[%c1_i32] : memref<3x!tpu.dma_semaphore, #tpu.memory_space<semaphore_mem>> -> memref<1x!tpu.dma_semaphore, #tpu.memory_space<semaphore_mem>>
      %22 = tpu.memref_squeeze %21 : memref<1x!tpu.dma_semaphore, #tpu.memory_space<semaphore_mem>> -> memref<!tpu.dma_semaphore, #tpu.memory_space<semaphore_mem>>
      tpu.wait_dma2 semaphore(%22 : memref<!tpu.dma_semaphore, #tpu.memory_space<semaphore_mem>>) src(%arg7 : memref<128x128xbf16, #tpu.memory_space<any>>) dst(%arg12 : memref<128x128xbf16, #tpu.memory_space<vmem>>)
      %c2_i32 = arith.constant 2 : i32
      %23 = tpu.memref_slice %arg14[%c2_i32] : memref<3x!tpu.dma_semaphore, #tpu.memory_space<semaphore_mem>> -> memref<1x!tpu.dma_semaphore, #tpu.memory_space<semaphore_mem>>
      %24 = tpu.memref_squeeze %23 : memref<1x!tpu.dma_semaphore, #tpu.memory_space<semaphore_mem>> -> memref<!tpu.dma_semaphore, #tpu.memory_space<semaphore_mem>>
      tpu.wait_dma2 semaphore(%24 : memref<!tpu.dma_semaphore, #tpu.memory_space<semaphore_mem>>) src(%arg8 : memref<128x128xbf16, #tpu.memory_space<any>>) dst(%arg13 : memref<128x128xbf16, #tpu.memory_space<vmem>>)
      %c0_11 = arith.constant 0 : index
      %c0_12 = arith.constant 0 : index
      %25 = vector.load %arg10[%c0_11, %c0_12] : memref<8x128xf32, #tpu.memory_space<vmem>>, vector<8x128xf32>
      %26 = arith.truncf %25 : vector<8x128xf32> to vector<8x128xbf16>
      %c0_13 = arith.constant 0 : index
      %c0_14 = arith.constant 0 : index
      %27 = vector.load %arg11[%c0_13, %c0_14] : memref<128x128xbf16, #tpu.memory_space<vmem>>, vector<128x128xbf16>
      %cst_15 = arith.constant dense<0.000000e+00> : vector<8x128xf32>
      %28 = tpu.matmul %26, %27, %cst_15 {dimension_numbers = #tpu.dot_dimension_numbers<[1], [0], [0], [1], [0, 0, 1, 1], [], []>} : vector<8x128xbf16>, vector<128x128xbf16>, vector<8x128xf32> -> vector<8x128xf32>
      %c0_16 = arith.constant 0 : index
      %c0_17 = arith.constant 0 : index
      %29 = vector.load %arg3[%c0_16, %c0_17] : memref<8x128xbf16, #tpu.memory_space<vmem>>, vector<8x128xbf16>
      %c0_18 = arith.constant 0 : index
      %c0_19 = arith.constant 0 : index
      %30 = vector.load %arg12[%c0_18, %c0_19] : memref<128x128xbf16, #tpu.memory_space<vmem>>, vector<128x128xbf16>
      %cst_20 = arith.constant dense<0.000000e+00> : vector<8x128xf32>
      %31 = tpu.matmul %29, %30, %cst_20 {dimension_numbers = #tpu.dot_dimension_numbers<[1], [0], [0], [1], [0, 0, 1, 1], [], []>} : vector<8x128xbf16>, vector<128x128xbf16>, vector<8x128xf32> -> vector<8x128xf32>
      %32 = arith.addf %28, %31 : vector<8x128xf32>
      %c0_21 = arith.constant 0 : index
      %c0_22 = arith.constant 0 : index
      %33 = vector.load %arg4[%c0_21, %c0_22] : memref<1x128xf32, #tpu.memory_space<vmem>>, vector<1x128xf32>
      %34 = vector.broadcast %33 : vector<1x128xf32> to vector<8x128xf32>
      %35 = arith.addf %32, %34 : vector<8x128xf32>
      %cst_23 = arith.constant 0.000000e+00 : f32
      %36 = vector.broadcast %cst_23 : f32 to vector<8x128xf32>
      %37 = arith.maximumf %35, %36 : vector<8x128xf32>
      %38 = arith.truncf %37 : vector<8x128xf32> to vector<8x128xbf16>
      %c0_24 = arith.constant 0 : index
      %c0_25 = arith.constant 0 : index
      %39 = vector.load %arg13[%c0_24, %c0_25] : memref<128x128xbf16, #tpu.memory_space<vmem>>, vector<128x128xbf16>
      %cst_26 = arith.constant dense<0.000000e+00> : vector<8x128xf32>
      %40 = tpu.matmul %38, %39, %cst_26 {dimension_numbers = #tpu.dot_dimension_numbers<[1], [0], [0], [1], [0, 0, 1, 1], [], []>} : vector<8x128xbf16>, vector<128x128xbf16>, vector<8x128xf32> -> vector<8x128xf32>
      %c0_27 = arith.constant 0 : index
      %c0_28 = arith.constant 0 : index
      %41 = vector.load %arg5[%c0_27, %c0_28] : memref<1x128xf32, #tpu.memory_space<vmem>>, vector<1x128xf32>
      %42 = vector.broadcast %41 : vector<1x128xf32> to vector<8x128xf32>
      %43 = arith.addf %40, %42 : vector<8x128xf32>
      %44 = tpu.iota {dimensions = array<i32: 1>} : vector<8x128xi32>
      %c8_i32 = arith.constant 8 : i32
      %45 = vector.broadcast %c8_i32 : i32 to vector<8x128xi32>
      %46 = arith.cmpi slt, %44, %45 : vector<8x128xi32>
      %cst_29 = arith.constant -1.000000e+30 : f32
      %47 = vector.broadcast %cst_29 : f32 to vector<8x128xf32>
      %48 = arith.select %46, %43, %47 : vector<8x128xi1>, vector<8x128xf32>
      %cst_30 = arith.constant dense<0xFF800000> : vector<8xf32>
      %49 = vector.multi_reduction <maximumf>, %48, %cst_30 [1] : vector<8x128xf32> to vector<8xf32>
      %50 = vector.shape_cast %49 : vector<8xf32> to vector<8x1xf32>
      %51 = vector.broadcast %50 : vector<8x1xf32> to vector<8x128xf32>
      %52 = arith.subf %48, %51 : vector<8x128xf32>
      %53 = math.exp %52 : vector<8x128xf32>
      %cst_31 = arith.constant dense<0.000000e+00> : vector<8xf32>
      %54 = vector.multi_reduction <add>, %53, %cst_31 [1] : vector<8x128xf32> to vector<8xf32>
      %55 = vector.shape_cast %54 : vector<8xf32> to vector<8x1xf32>
      %56 = math.log %55 : vector<8x1xf32>
      %57 = vector.broadcast %56 : vector<8x1xf32> to vector<8x128xf32>
      %58 = arith.subf %52, %57 : vector<8x128xf32>
      %c0_32 = arith.constant 0 : index
      %c0_33 = arith.constant 0 : index
      %59 = vector.load %arg9[%c0_32, %c0_33] : memref<8x128xf32, #tpu.memory_space<vmem>>, vector<8x128xf32>
      tpu.vector_store %arg9[%c0_32, %c0_33], %58 {strides = array<i32>} : memref<8x128xf32, #tpu.memory_space<vmem>>, vector<8x128xf32>,
    } else {
    }
    return
  }
  func.func @transform_0(%arg0: i32) -> (i32, i32) {
    %c0_i32 = arith.constant 0 : i32
    %c0_i32_0 = arith.constant 0 : i32
    return %c0_i32, %arg0 : i32, i32
  }
  func.func @transform_1(%arg0: i32) -> (i32, i32) {
    %c0_i32 = arith.constant 0 : i32
    %c0_i32_0 = arith.constant 0 : i32
    return %arg0, %c0_i32 : i32, i32
  }
  func.func @transform_2(%arg0: i32) -> (i32, i32) {
    %c0_i32 = arith.constant 0 : i32
    %c0_i32_0 = arith.constant 0 : i32
    %c0_i32_1 = arith.constant 0 : i32
    return %c0_i32, %c0_i32_0 : i32, i32
  }
  func.func @transform_3(%arg0: i32) -> (i32, i32) {
    %c0_i32 = arith.constant 0 : i32
    %c0_i32_0 = arith.constant 0 : i32
    %c0_i32_1 = arith.constant 0 : i32
    return %c0_i32, %c0_i32_0 : i32, i32
  }
  func.func @transform_4(%arg0: i32) -> (i32, i32) {
    %c0_i32 = arith.constant 0 : i32
    %c0_i32_0 = arith.constant 0 : i32
    %c0_i32_1 = arith.constant 0 : i32
    return %c0_i32, %c0_i32_0 : i32, i32
  }
  func.func @transform_8(%arg0: i32) -> (i32, i32) {
    %c0_i32 = arith.constant 0 : i32
    %c0_i32_0 = arith.constant 0 : i32
    %c0_i32_1 = arith.constant 0 : i32
    return %c0_i32, %c0_i32_0 : i32, i32
  }
}

</mosaic_0001>

<llo_original>
// kernel: tpu_custom_call.1
$region0: #{tpu_custom_call.1}
  #allocation0 [shape = 'u32[]', space=smem, size = 0x4, offset = 0x4, fixed_abs, tag = 'smem constant byte address 0x4 - core index']
  #allocation1 [shape = 'u32[144,128]{1,0:T(1,128)}', space=vmem, size = 0x12000, scoped, tag = 'internal scratch']
  #allocation2 [shape = 'f32[8,128]{1,0:T(8,128)}', space=vmem, size = 0x1000, scoped, tag = 'scratch operand']
  #allocation3 [shape = 'bf16[128,128]{1,0:T(8,128)(2,1)}', space=vmem, size = 0x8000, scoped, tag = 'scratch operand']
  #allocation4 [shape = 'bf16[128,128]{1,0:T(8,128)(2,1)}', space=vmem, size = 0x8000, scoped, tag = 'scratch operand']
  #allocation5 [shape = 'bf16[128,128]{1,0:T(8,128)(2,1)}', space=vmem, size = 0x8000, scoped, tag = 'scratch operand']
  #allocation6 [shape = 's32[3]{0}', space=sflag, size = 0xc, scoped, tag = 'scratch operand']
  #allocation14 [shape = 's32[]', space=sflag, size = 0x4, offset = 0, fixed_abs, tag = 'sflag constant byte address 0x0 - dummy sync flag']
  #allocation15 [shape = 's32[]', space=sflag, size = 0x4, offset = 0, fixed_abs, tag = 'sflag constant byte address 0x0 - dummy sync flag']
  #allocation16 [shape = 'u32[]', space=smem, size = 0x4, offset = 0x44, fixed_abs, tag = 'smem constant byte address 0x44 - assertion arg 0']
  #allocation17 [shape = 'u32[]', space=smem, size = 0x4, offset = 0x48, fixed_abs, tag = 'smem constant byte address 0x48 - assertion arg 1']
  #allocation18 [shape = 's32[]', space=sflag, size = 0x4, offset = 0, fixed_abs, tag = 'sflag constant byte address 0x0 - dummy sync flag']
  #allocation19 [shape = 's32[]', space=sflag, size = 0x4, offset = 0, fixed_abs, tag = 'sflag constant byte address 0x0 - dummy sync flag']
  #allocation20 [shape = 's32[]', space=sflag, size = 0x4, offset = 0, fixed_abs, tag = 'sflag constant byte address 0x0 - dummy sync flag']
  #allocation21 [shape = 's32[]', space=sflag, size = 0x4, offset = 0, fixed_abs, tag = 'sflag constant byte address 0x0 - dummy sync flag']
  %s0 = inlined_call_operand.hbm [shape: s32[1,128], index: 0, kind: input, shape index: {}]
  %s1 = inlined_call_operand.hbm [shape: bf16[128,128], index: 1, kind: input, shape index: {}]
  %s2 = inlined_call_operand.hbm [shape: bf16[8,128], index: 2, kind: input, shape index: {}]
  %s3 = inlined_call_operand.vmem [shape: f32[1,128], index: 3, kind: input, shape index: {}]
  %s4 = inlined_call_operand.vmem [shape: f32[1,128], index: 4, kind: input, shape index: {}]
  %s5 = inlined_call_operand.hbm [shape: bf16[128,128], index: 5, kind: input, shape index: {}]
  %s6 = inlined_call_operand.hbm [shape: bf16[128,128], index: 6, kind: input, shape index: {}]
  %s7 = inlined_call_operand.hbm [shape: bf16[128,128], index: 7, kind: input, shape index: {}]
  %s8 = inlined_call_operand.hbm [shape: f32[8,128], index: 8, kind: output, shape index: {}]
  %s9 = sld [smem:[#allocation0]]
  $region62: #{tpu_custom_call.1} parent=0
    _
  %s11 = ssub.s32 1, %s9
  %s12 = scalar_select 0, %s11, %s9
  $region1: #{tpu_custom_call.1} parent=0
    #allocation7 [shape = 'u8[512]{0}', space=vmem, size = 0x400, scoped, tag = 'input window, operand 0, single buffered']
    #allocation8 [shape = 's32[1]{0}', space=sflag, size = 0x4, scoped, tag = 'scoped memory for tpu_custom_call.1']
    #allocation9 [shape = 's32[1]{0}', space=sflag, size = 0x4, scoped, tag = 'scoped memory for tpu_custom_call.1']
    #allocation10 [shape = 'u8[32768]{0}', space=vmem, size = 0x8000, scoped, tag = 'input window, operand 1, single buffered']
    #allocation11 [shape = 's32[1]{0}', space=sflag, size = 0x4, scoped, tag = 'scoped memory for tpu_custom_call.1']
    #allocation12 [shape = 'u8[2048]{0}', space=vmem, size = 0x800, scoped, tag = 'input window, operand 2, single buffered']
    #allocation13 [shape = 'u8[4096]{0}', space=vmem, size = 0x1000, scoped, tag = 'output window, operand 0, single buffered']
    %13 = vsyncpa [#allocation8], 0
    %14 = vsyncpa [#allocation11], 0
    %15 = vsyncpa [#allocation9], 0
    // Predicated region
    $region2: #{tpu_custom_call.1} parent=1 // pred_check
      _
    $region3: #{tpu_custom_call.1} parent=1 // pred_check_branch
      %17 = sbr.rel (0) target = $region5
    $region4: #{tpu_custom_call.1} parent=1 // pred_region
      %s19 = ssub.s32 16, 16
      %20 = vsyncadd [#allocation8], %s19
      %s22 = sshll.u32 [#allocation7], 4
      %s23 = int_to_ptr.vmem [resolvable:$true] %s22
      %25 = dma.hbm_to_vmem [thread:$0]  %s0, 16, %s23, [#allocation8]
    $region5: #{tpu_custom_call.1} parent=1 // pred_fallthru
      _
    // Predicated region
    $region6: #{tpu_custom_call.1} parent=1 // pred_check
      _
    $region7: #{tpu_custom_call.1} parent=1 // pred_check_branch
      %27 = sbr.rel (0) target = $region9
    $region8: #{tpu_custom_call.1} parent=1 // pred_region
      %s29 = ssub.s32 1024, 1024
      %30 = vsyncadd [#allocation11], %s29
      %s31 = sshll.u32 [#allocation10], 4
      %s32 = int_to_ptr.vmem [resolvable:$true] %s31
      %37 = dma.hbm_to_vmem [thread:$0]  %s1, 1024, %s32, [#allocation11], 64, 64, 4
    $region9: #{tpu_custom_call.1} parent=1 // pred_fallthru
      _
    // Predicated region
    $region10: #{tpu_custom_call.1} parent=1 // pred_check
      _
    $region11: #{tpu_custom_call.1} parent=1 // pred_check_branch
      %39 = sbr.rel (0) target = $region13
    $region12: #{tpu_custom_call.1} parent=1 // pred_region
      %s41 = ssub.s32 64, 64
      %42 = vsyncadd [#allocation11], %s41
      %s44 = sshll.u32 [#allocation12], 4
      %s45 = int_to_ptr.vmem [resolvable:$true] %s44
      %47 = dma.hbm_to_vmem [thread:$0]  %s2, 64, %s45, [#allocation11]
    $region13: #{tpu_custom_call.1} parent=1 // pred_fallthru
      _
    // Predicated region
    $region14: #{tpu_custom_call.1} parent=1 // pred_check
      _
    $region15: #{tpu_custom_call.1} parent=1 // pred_check_branch
      %49 = sbr.rel (0) target = $region17
    $region16: #{tpu_custom_call.1} parent=1 // pred_region
      _
    $region17: #{tpu_custom_call.1} parent=1 // pred_fallthru
      _
    // Predicated region
    $region18: #{tpu_custom_call.1} parent=1 // pred_check
      _
    $region19: #{tpu_custom_call.1} parent=1 // pred_check_branch
      %51 = sbr.rel (0) target = $region21
    $region20: #{tpu_custom_call.1} parent=1 // pred_region
      _
    $region21: #{tpu_custom_call.1} parent=1 // pred_fallthru
      _
    // Predicated region
    $region22: #{tpu_custom_call.1} parent=1 // pred_check
      _
    $region23: #{tpu_custom_call.1} parent=1 // pred_check_branch
      %53 = sbr.rel (0) target = $region25
    $region24: #{tpu_custom_call.1} parent=1 // pred_region
      %54 = dma.done [#allocation8], 16
    $region25: #{tpu_custom_call.1} parent=1 // pred_fallthru
      _
    // Predicated region
    $region26: #{tpu_custom_call.1} parent=1 // pred_check
      _
    $region27: #{tpu_custom_call.1} parent=1 // pred_check_branch
      %56 = sbr.rel (0) target = $region29
    $region28: #{tpu_custom_call.1} parent=1 // pred_region
      %57 = dma.done [#allocation11], 1024
    $region29: #{tpu_custom_call.1} parent=1 // pred_fallthru
      _
    // Predicated region
    $region30: #{tpu_custom_call.1} parent=1 // pred_check
      _
    $region31: #{tpu_custom_call.1} parent=1 // pred_check_branch
      %59 = sbr.rel (0) target = $region33
    $region32: #{tpu_custom_call.1} parent=1 // pred_region
      %60 = dma.done [#allocation11], 64
    $region33: #{tpu_custom_call.1} parent=1 // pred_fallthru
      _
    %p62 = scmp.eq.s32.totalorder 0, 0
    // Predicated region
    $region34: #{tpu_custom_call.1} parent=1 // pred_check
      %p63 = pneg %p62
    $region35: #{tpu_custom_call.1} parent=1 // pred_check_branch
      %65 = sbr.rel (%p63) target = $region37
    $region36: #{tpu_custom_call.1} parent=1 // pred_region
      %66 = vst [vmem:[#allocation2] sm:$0xff] 0.0
      // Predicated region
      $region38: #{tpu_custom_call.1} parent=36 // pred_check
        _
      $region39: #{tpu_custom_call.1} parent=36 // pred_check_branch
        %68 = sbr.rel target = $region41
      $region40: #{tpu_custom_call.1} parent=36 // pred_region
        %69 = sst [smem:[#allocation16]] [#allocation15]
        %70 = sst [smem:[#allocation17]] [#allocation14]
      $region41: #{tpu_custom_call.1} parent=36 // pred_fallthru
        _
      %72 = shalt.err (0)
      %s74 = sshll.u32 [#allocation3], 4
      %s75 = int_to_ptr.vmem [resolvable:$true] %s74
      %77 = dma.hbm_to_vmem [thread:$0]  %s5, 1024, %s75, [#allocation6]
      %s78 = scalar_lea.sflag [#allocation6], 1
      // Predicated region
      $region42: #{tpu_custom_call.1} parent=36 // pred_check
        _
      $region43: #{tpu_custom_call.1} parent=36 // pred_check_branch
        %80 = sbr.rel target = $region45
      $region44: #{tpu_custom_call.1} parent=36 // pred_region
        %81 = sst [smem:[#allocation16]] [#allocation19]
        %82 = sst [smem:[#allocation17]] [#allocation18]
      $region45: #{tpu_custom_call.1} parent=36 // pred_fallthru
        _
      %84 = shalt.err (0)
      %s86 = sshll.u32 [#allocation4], 4
      %s87 = int_to_ptr.vmem [resolvable:$true] %s86
      %89 = dma.hbm_to_vmem [thread:$0]  %s6, 1024, %s87, %s78
      %s90 = scalar_lea.sflag [#allocation6], 2
      // Predicated region
      $region46: #{tpu_custom_call.1} parent=36 // pred_check
        _
      $region47: #{tpu_custom_call.1} parent=36 // pred_check_branch
        %92 = sbr.rel target = $region49
      $region48: #{tpu_custom_call.1} parent=36 // pred_region
        %93 = sst [smem:[#allocation16]] [#allocation21]
        %94 = sst [smem:[#allocation17]] [#allocation20]
      $region49: #{tpu_custom_call.1} parent=36 // pred_fallthru
        _
      %96 = shalt.err (0)
      %s98 = sshll.u32 [#allocation5], 4
      %s99 = int_to_ptr.vmem [resolvable:$true] %s98
      %101 = dma.hbm_to_vmem [thread:$0]  %s7, 1024, %s99, %s90
    $region37: #{tpu_custom_call.1} parent=1 // pred_fallthru
      _
    %v102 = vld [vmem:[#allocation7] sm:$0x1]
    %v103 = vld [vmem:[#allocation10] sm:$0xf]
    %v104 = vld [vmem:[#allocation10 + $0x4] sm:$0xf]
    %v105 = vld [vmem:[#allocation10 + $0x8] sm:$0xf]
    %v106 = vld [vmem:[#allocation10 + $0xc] sm:$0xf]
    %v107 = vld [vmem:[#allocation10 + $0x10] sm:$0xf]
    %v108 = vld [vmem:[#allocation10 + $0x14] sm:$0xf]
    %v109 = vld [vmem:[#allocation10 + $0x18] sm:$0xf]
    %v110 = vld [vmem:[#allocation10 + $0x1c] sm:$0xf]
    %v111 = vld [vmem:[#allocation10 + $0x20] sm:$0xf]
    %v112 = vld [vmem:[#allocation10 + $0x24] sm:$0xf]
    %v113 = vld [vmem:[#allocation10 + $0x28] sm:$0xf]
    %v114 = vld [vmem:[#allocation10 + $0x2c] sm:$0xf]
    %v115 = vld [vmem:[#allocation10 + $0x30] sm:$0xf]
    %v116 = vld [vmem:[#allocation10 + $0x34] sm:$0xf]
    %v117 = vld [vmem:[#allocation10 + $0x38] sm:$0xf]
    %v118 = vld [vmem:[#allocation10 + $0x3c] sm:$0xf]
    %v119 = vlaneseq
    %v120 = vshrl.u32 %v119, 7
    %v121 = vlaneseq
    %v122 = vshrl.u32 %v121, 7
    %v123 = vsub.s32 0, %v122
    %v124 = vrot.slane %v102, %v123
    %vm125 = vcmp.eq.s32.totalorder %v120, %v124
    %v126 = vsel %vm125, 1, 0
    %v127 = vcvt.s32.f32 %v126
    %v128 = vpack.c.bf16 %v127, %v127
    %v129 = vld [vmem:[#allocation2] sm:$0xff]
    %v146 = vunpack.c.l.b16 %v103
    %v147 = vunpack.c.l.b16 %v104
    %v148 = vunpack.c.l.b16 %v105
    %v149 = vunpack.c.l.b16 %v106
    %v150 = vunpack.c.l.b16 %v107
    %v151 = vunpack.c.l.b16 %v108
    %v152 = vunpack.c.l.b16 %v109
    %v153 = vunpack.c.l.b16 %v110
    %v154 = vunpack.c.l.b16 %v111
    %v155 = vunpack.c.l.b16 %v112
    %v156 = vunpack.c.l.b16 %v113
    %v157 = vunpack.c.l.b16 %v114
    %v158 = vunpack.c.l.b16 %v115
    %v159 = vunpack.c.l.b16 %v116
    %v160 = vunpack.c.l.b16 %v117
    %v161 = vunpack.c.l.b16 %v118
    %v162 = vpack.c.b16 %v147, %v146
    %v163 = vpack.c.b16 %v149, %v148
    %v164 = vpack.c.b16 %v151, %v150
    %v165 = vpack.c.b16 %v153, %v152
    %v166 = vpack.c.b16 %v155, %v154
    %v167 = vpack.c.b16 %v157, %v156
    %v168 = vpack.c.b16 %v159, %v158
    %v169 = vpack.c.b16 %v161, %v160
    %178 = vmatprep.subr.bf16.mxu0 0
    %179 = vmatpush1.bf16.msra.mxu0 %v169
    %180 = vmatprep.subr.bf16.mxu0 0
    %181 = vmatpush1.bf16.msra.mxu0 %v168
    %182 = vmatprep.subr.bf16.mxu0 0
    %183 = vmatpush1.bf16.msra.mxu0 %v167
    %184 = vmatprep.subr.bf16.mxu0 0
    %185 = vmatpush1.bf16.msra.mxu0 %v166
    %186 = vmatprep.subr.bf16.mxu0 0
    %187 = vmatpush1.bf16.msra.mxu0 %v165
    %188 = vmatprep.subr.bf16.mxu0 0
    %189 = vmatpush1.bf16.msra.mxu0 %v164
    %190 = vmatprep.subr.bf16.mxu0 0
    %191 = vmatpush1.bf16.msra.mxu0 %v163
    %192 = vmatprep.subr.bf16.mxu0 0
    %193 = vmatpush1.bf16.msra.mxu0 %v162
    %194 = vmatprep.subr.bf16.mxu0 0
    %195 = vmatpush2.bf16.msra.mxu0 0
    %196 = vmatprep.subr.bf16.mxu0 0
    %197 = vmatpush2.bf16.msra.mxu0 0
    %198 = vmatprep.subr.bf16.mxu0 0
    %199 = vmatpush2.bf16.msra.mxu0 0
    %200 = vmatprep.subr.bf16.mxu0 0
    %201 = vmatpush2.bf16.msra.mxu0 0
    %202 = vmatprep.subr.bf16.mxu0 0
    %203 = vmatpush2.bf16.msra.mxu0 0
    %204 = vmatprep.subr.bf16.mxu0 0
    %205 = vmatpush2.bf16.msra.mxu0 0
    %206 = vmatprep.subr.bf16.mxu0 0
    %207 = vmatpush2.bf16.msra.mxu0 0
    %208 = vmatprep.subr.bf16.mxu0 0
    %209 = vmatpush2.bf16.msra.mxu0 0
    %210 = vmatprep.mubr.bf16.mxu0 0
    %211 = vmatmul.mubr.bf16.gmra.mxu0 %v128
    %v212 = vpop.f32.mrf.mxu0
    %v213 = vadd.f32 0.0, %v212
    %v214 = vpop.f32.mrf.mxu0
    %v215 = vpop.f32.mrf.mxu0
    %v216 = vpop.f32.mrf.mxu0
    %217 = vdwg.mxu0
    %v218 = vadd.f32 %v129, %v213
    %219 = vst [vmem:[#allocation2] sm:$0xff] %v218
    // Predicated region
    $region50: #{tpu_custom_call.1} parent=1 // pred_check
      %p220 = pneg %p62
    $region51: #{tpu_custom_call.1} parent=1 // pred_check_branch
      %222 = sbr.rel (%p220) target = $region53
    $region52: #{tpu_custom_call.1} parent=1 // pred_region
      %s223 = smul.u32 4, 16
      %s224 = smul.u32 %s223, 1
      %s225 = sshll.u32 %s224, 4
      %226 = dma.done [#allocation6], %s225
      %s227 = scalar_lea.sflag [#allocation6], 1
      %s228 = sshll.u32 %s224, 4
      %229 = dma.done %s227, %s228
      %s230 = scalar_lea.sflag [#allocation6], 2
      %s231 = sshll.u32 %s224, 4
      %232 = dma.done %s230, %s231
      %v233 = vld [vmem:[#allocation2] sm:$0xff]
      %v234 = vpack.c.bf16 %v233, %v233
      %v235 = vld [vmem:[#allocation3] sm:$0xf]
      %v236 = vld [vmem:[#allocation3 + $0x4] sm:$0xf]
      %v237 = vld [vmem:[#allocation3 + $0x8] sm:$0xf]
      %v238 = vld [vmem:[#allocation3 + $0xc] sm:$0xf]
      %v239 = vld [vmem:[#allocation3 + $0x10] sm:$0xf]
      %v240 = vld [vmem:[#allocation3 + $0x14] sm:$0xf]
      %v241 = vld [vmem:[#allocation3 + $0x18] sm:$0xf]
      %v242 = vld [vmem:[#allocation3 + $0x1c] sm:$0xf]
      %v243 = vld [vmem:[#allocation3 + $0x20] sm:$0xf]
      %v244 = vld [vmem:[#allocation3 + $0x24] sm:$0xf]
      %v245 = vld [vmem:[#allocation3 + $0x28] sm:$0xf]
      %v246 = vld [vmem:[#allocation3 + $0x2c] sm:$0xf]
      %v247 = vld [vmem:[#allocation3 + $0x30] sm:$0xf]
      %v248 = vld [vmem:[#allocation3 + $0x34] sm:$0xf]
      %v249 = vld [vmem:[#allocation3 + $0x38] sm:$0xf]
      %v250 = vld [vmem:[#allocation3 + $0x3c] sm:$0xf]
      %v251 = vld [vmem:[#allocation12] sm:$0xf]
      %v252 = vld [vmem:[#allocation4] sm:$0xf]
      %v253 = vld [vmem:[#allocation4 + $0x4] sm:$0xf]
      %v254 = vld [vmem:[#allocation4 + $0x8] sm:$0xf]
      %v255 = vld [vmem:[#allocation4 + $0xc] sm:$0xf]
      %v256 = vld [vmem:[#allocation4 + $0x10] sm:$0xf]
      %v257 = vld [vmem:[#allocation4 + $0x14] sm:$0xf]
      %v258 = vld [vmem:[#allocation4 + $0x18] sm:$0xf]
      %v259 = vld [vmem:[#allocation4 + $0x1c] sm:$0xf]
      %v260 = vld [vmem:[#allocation4 + $0x20] sm:$0xf]
      %v261 = vld [vmem:[#allocation4 + $0x24] sm:$0xf]
      %v262 = vld [vmem:[#allocation4 + $0x28] sm:$0xf]
      %v263 = vld [vmem:[#allocation4 + $0x2c] sm:$0xf]
      %v264 = vld [vmem:[#allocation4 + $0x30] sm:$0xf]
      %v265 = vld [vmem:[#allocation4 + $0x34] sm:$0xf]
      %v266 = vld [vmem:[#allocation4 + $0x38] sm:$0xf]
      %v267 = vld [vmem:[#allocation4 + $0x3c] sm:$0xf]
      %v284 = vunpack.c.l.b16 %v252
      %v285 = vunpack.c.l.b16 %v253
      %v286 = vunpack.c.l.b16 %v254
      %v287 = vunpack.c.l.b16 %v255
      %v288 = vunpack.c.l.b16 %v256
      %v289 = vunpack.c.l.b16 %v257
      %v290 = vunpack.c.l.b16 %v258
      %v291 = vunpack.c.l.b16 %v259
      %v292 = vunpack.c.l.b16 %v260
      %v293 = vunpack.c.l.b16 %v261
      %v294 = vunpack.c.l.b16 %v262
      %v295 = vunpack.c.l.b16 %v263
      %v296 = vunpack.c.l.b16 %v264
      %v297 = vunpack.c.l.b16 %v265
      %v298 = vunpack.c.l.b16 %v266
      %v299 = vunpack.c.l.b16 %v267
      %v300 = vpack.c.b16 %v285, %v284
      %v301 = vpack.c.b16 %v287, %v286
      %v302 = vpack.c.b16 %v289, %v288
      %v303 = vpack.c.b16 %v291, %v290
      %v304 = vpack.c.b16 %v293, %v292
      %v305 = vpack.c.b16 %v295, %v294
      %v306 = vpack.c.b16 %v297, %v296
      %v307 = vpack.c.b16 %v299, %v298
      %316 = vmatprep.subr.bf16.mxu0 0
      %317 = vmatpush1.bf16.msra.mxu0 %v307
      %318 = vmatprep.subr.bf16.mxu0 0
      %319 = vmatpush1.bf16.msra.mxu0 %v306
      %320 = vmatprep.subr.bf16.mxu0 0
      %321 = vmatpush1.bf16.msra.mxu0 %v305
      %322 = vmatprep.subr.bf16.mxu0 0
      %323 = vmatpush1.bf16.msra.mxu0 %v304
      %324 = vmatprep.subr.bf16.mxu0 0
      %325 = vmatpush1.bf16.msra.mxu0 %v303
      %326 = vmatprep.subr.bf16.mxu0 0
      %327 = vmatpush1.bf16.msra.mxu0 %v302
      %328 = vmatprep.subr.bf16.mxu0 0
      %329 = vmatpush1.bf16.msra.mxu0 %v301
      %330 = vmatprep.subr.bf16.mxu0 0
      %331 = vmatpush1.bf16.msra.mxu0 %v300
      %332 = vmatprep.subr.bf16.mxu0 0
      %333 = vmatpush2.bf16.msra.mxu0 0
      %334 = vmatprep.subr.bf16.mxu0 0
      %335 = vmatpush2.bf16.msra.mxu0 0
      %336 = vmatprep.subr.bf16.mxu0 0
      %337 = vmatpush2.bf16.msra.mxu0 0
      %338 = vmatprep.subr.bf16.mxu0 0
      %339 = vmatpush2.bf16.msra.mxu0 0
      %340 = vmatprep.subr.bf16.mxu0 0
      %341 = vmatpush2.bf16.msra.mxu0 0
      %342 = vmatprep.subr.bf16.mxu0 0
      %343 = vmatpush2.bf16.msra.mxu0 0
      %344 = vmatprep.subr.bf16.mxu0 0
      %345 = vmatpush2.bf16.msra.mxu0 0
      %346 = vmatprep.subr.bf16.mxu0 0
      %347 = vmatpush2.bf16.msra.mxu0 0
      %348 = vmatprep.mubr.bf16.mxu0 0
      %349 = vmatmul.mubr.bf16.gmra.mxu0 %v251
      %v350 = vpop.f32.mrf.mxu0
      %v351 = vadd.f32 0.0, %v350
      %v352 = vpop.f32.mrf.mxu0
      %v353 = vpop.f32.mrf.mxu0
      %v354 = vpop.f32.mrf.mxu0
      %355 = vdwg.mxu0
      %v372 = vunpack.c.l.b16 %v235
      %v373 = vunpack.c.l.b16 %v236
      %v374 = vunpack.c.l.b16 %v237
      %v375 = vunpack.c.l.b16 %v238
      %v376 = vunpack.c.l.b16 %v239
      %v377 = vunpack.c.l.b16 %v240
      %v378 = vunpack.c.l.b16 %v241
      %v379 = vunpack.c.l.b16 %v242
      %v380 = vunpack.c.l.b16 %v243
      %v381 = vunpack.c.l.b16 %v244
      %v382 = vunpack.c.l.b16 %v245
      %v383 = vunpack.c.l.b16 %v246
      %v384 = vunpack.c.l.b16 %v247
      %v385 = vunpack.c.l.b16 %v248
      %v386 = vunpack.c.l.b16 %v249
      %v387 = vunpack.c.l.b16 %v250
      %v388 = vpack.c.b16 %v373, %v372
      %v389 = vpack.c.b16 %v375, %v374
      %v390 = vpack.c.b16 %v377, %v376
      %v391 = vpack.c.b16 %v379, %v378
      %v392 = vpack.c.b16 %v381, %v380
      %v393 = vpack.c.b16 %v383, %v382
      %v394 = vpack.c.b16 %v385, %v384
      %v395 = vpack.c.b16 %v387, %v386
      %404 = vmatprep.subr.bf16.mxu0 0
      %405 = vmatpush1.bf16.msra.mxu0 %v395
      %406 = vmatprep.subr.bf16.mxu0 0
      %407 = vmatpush1.bf16.msra.mxu0 %v394
      %408 = vmatprep.subr.bf16.mxu0 0
      %409 = vmatpush1.bf16.msra.mxu0 %v393
      %410 = vmatprep.subr.bf16.mxu0 0
      %411 = vmatpush1.bf16.msra.mxu0 %v392
      %412 = vmatprep.subr.bf16.mxu0 0
      %413 = vmatpush1.bf16.msra.mxu0 %v391
      %414 = vmatprep.subr.bf16.mxu0 0
      %415 = vmatpush1.bf16.msra.mxu0 %v390
      %416 = vmatprep.subr.bf16.mxu0 0
      %417 = vmatpush1.bf16.msra.mxu0 %v389
      %418 = vmatprep.subr.bf16.mxu0 0
      %419 = vmatpush1.bf16.msra.mxu0 %v388
      %420 = vmatprep.subr.bf16.mxu0 0
      %421 = vmatpush2.bf16.msra.mxu0 0
      %422 = vmatprep.subr.bf16.mxu0 0
      %423 = vmatpush2.bf16.msra.mxu0 0
      %424 = vmatprep.subr.bf16.mxu0 0
      %425 = vmatpush2.bf16.msra.mxu0 0
      %426 = vmatprep.subr.bf16.mxu0 0
      %427 = vmatpush2.bf16.msra.mxu0 0
      %428 = vmatprep.subr.bf16.mxu0 0
      %429 = vmatpush2.bf16.msra.mxu0 0
      %430 = vmatprep.subr.bf16.mxu0 0
      %431 = vmatpush2.bf16.msra.mxu0 0
      %432 = vmatprep.subr.bf16.mxu0 0
      %433 = vmatpush2.bf16.msra.mxu0 0
      %434 = vmatprep.subr.bf16.mxu0 0
      %435 = vmatpush2.bf16.msra.mxu0 0
      %436 = vmatprep.mubr.bf16.mxu0 0
      %437 = vmatmul.mubr.bf16.gmra.mxu0 %v234
      %v438 = vpop.f32.mrf.mxu0
      %v439 = vadd.f32 %v351, %v438
      %v440 = vpop.f32.mrf.mxu0
      %v441 = vpop.f32.mrf.mxu0
      %v442 = vpop.f32.mrf.mxu0
      %443 = vdwg.mxu0
      %v444 = vld [vmem:[%s3] sm:$0x1]
      %v446 = vlaneseq
      %v447 = vshrl.u32 %v446, 7
      %v448 = vsub.s32 0, %v447
      %v449 = vrot.slane %v444, %v448
      %v451 = vadd.f32 %v439, %v449
      %v452 = vmax.f32 %v451, 0.0
      %v453 = vpack.c.bf16 %v452, %v452
      %v454 = vld [vmem:[#allocation5] sm:$0xf]
      %v455 = vld [vmem:[#allocation5 + $0x4] sm:$0xf]
      %v456 = vld [vmem:[#allocation5 + $0x8] sm:$0xf]
      %v457 = vld [vmem:[#allocation5 + $0xc] sm:$0xf]
      %v458 = vld [vmem:[#allocation5 + $0x10] sm:$0xf]
      %v459 = vld [vmem:[#allocation5 + $0x14] sm:$0xf]
      %v460 = vld [vmem:[#allocation5 + $0x18] sm:$0xf]
      %v461 = vld [vmem:[#allocation5 + $0x1c] sm:$0xf]
      %v462 = vld [vmem:[#allocation5 + $0x20] sm:$0xf]
      %v463 = vld [vmem:[#allocation5 + $0x24] sm:$0xf]
      %v464 = vld [vmem:[#allocation5 + $0x28] sm:$0xf]
      %v465 = vld [vmem:[#allocation5 + $0x2c] sm:$0xf]
      %v466 = vld [vmem:[#allocation5 + $0x30] sm:$0xf]
      %v467 = vld [vmem:[#allocation5 + $0x34] sm:$0xf]
      %v468 = vld [vmem:[#allocation5 + $0x38] sm:$0xf]
      %v469 = vld [vmem:[#allocation5 + $0x3c] sm:$0xf]
      %v470 = vld [vmem:[%s4] sm:$0x1]
      %v472 = vlaneseq
      %v473 = vshrl.u32 %v472, 7
      %v474 = vsub.s32 0, %v473
      %v475 = vrot.slane %v470, %v474
      %v493 = vunpack.c.l.b16 %v454
      %v494 = vunpack.c.l.b16 %v455
      %v495 = vunpack.c.l.b16 %v456
      %v496 = vunpack.c.l.b16 %v457
      %v497 = vunpack.c.l.b16 %v458
      %v498 = vunpack.c.l.b16 %v459
      %v499 = vunpack.c.l.b16 %v460
      %v500 = vunpack.c.l.b16 %v461
      %v501 = vunpack.c.l.b16 %v462
      %v502 = vunpack.c.l.b16 %v463
      %v503 = vunpack.c.l.b16 %v464
      %v504 = vunpack.c.l.b16 %v465
      %v505 = vunpack.c.l.b16 %v466
      %v506 = vunpack.c.l.b16 %v467
      %v507 = vunpack.c.l.b16 %v468
      %v508 = vunpack.c.l.b16 %v469
      %v509 = vpack.c.b16 %v494, %v493
      %v510 = vpack.c.b16 %v496, %v495
      %v511 = vpack.c.b16 %v498, %v497
      %v512 = vpack.c.b16 %v500, %v499
      %v513 = vpack.c.b16 %v502, %v501
      %v514 = vpack.c.b16 %v504, %v503
      %v515 = vpack.c.b16 %v506, %v505
      %v516 = vpack.c.b16 %v508, %v507
      %525 = vmatprep.subr.bf16.mxu0 0
      %526 = vmatpush1.bf16.msra.mxu0 %v516
      %527 = vmatprep.subr.bf16.mxu0 0
      %528 = vmatpush1.bf16.msra.mxu0 %v515
      %529 = vmatprep.subr.bf16.mxu0 0
      %530 = vmatpush1.bf16.msra.mxu0 %v514
      %531 = vmatprep.subr.bf16.mxu0 0
      %532 = vmatpush1.bf16.msra.mxu0 %v513
      %533 = vmatprep.subr.bf16.mxu0 0
      %534 = vmatpush1.bf16.msra.mxu0 %v512
      %535 = vmatprep.subr.bf16.mxu0 0
      %536 = vmatpush1.bf16.msra.mxu0 %v511
      %537 = vmatprep.subr.bf16.mxu0 0
      %538 = vmatpush1.bf16.msra.mxu0 %v510
      %539 = vmatprep.subr.bf16.mxu0 0
      %540 = vmatpush1.bf16.msra.mxu0 %v509
      %541 = vmatprep.subr.bf16.mxu0 0
      %542 = vmatpush2.bf16.msra.mxu0 0
      %543 = vmatprep.subr.bf16.mxu0 0
      %544 = vmatpush2.bf16.msra.mxu0 0
      %545 = vmatprep.subr.bf16.mxu0 0
      %546 = vmatpush2.bf16.msra.mxu0 0
      %547 = vmatprep.subr.bf16.mxu0 0
      %548 = vmatpush2.bf16.msra.mxu0 0
      %549 = vmatprep.subr.bf16.mxu0 0
      %550 = vmatpush2.bf16.msra.mxu0 0
      %551 = vmatprep.subr.bf16.mxu0 0
      %552 = vmatpush2.bf16.msra.mxu0 0
      %553 = vmatprep.subr.bf16.mxu0 0
      %554 = vmatpush2.bf16.msra.mxu0 0
      %555 = vmatprep.subr.bf16.mxu0 0
      %556 = vmatpush2.bf16.msra.mxu0 0
      %557 = vmatprep.mubr.bf16.mxu0 0
      %558 = vmatmul.mubr.bf16.gmra.mxu0 %v453
      %v559 = vpop.f32.mrf.mxu0
      %v560 = vadd.f32 %v475, %v559
      %v561 = vpop.f32.mrf.mxu0
      %v562 = vpop.f32.mrf.mxu0
      %v563 = vpop.f32.mrf.mxu0
      %564 = vdwg.mxu0
      %v565 = vlaneseq
      %v566 = vand.u32 %v565, 127
      %vm567 = vcmp.lt.s32.totalorder %v566, 8
      %v568 = vsel %vm567, %v560, -1e+30
      %569 = vmax.xlane.f32.xlu0 %v568
      %v570 = vpop.xlane.xlu0 %569
      %v571 = vsub.f32 %v568, %v570
      %v572 = vmul.f32 %v571, 1.442695
      %v573 = vpow.pop %v572
      %574 = vadd.xlane.f32.xlu0 %v573
      %v575 = vpop.xlane.xlu0 %574
      %v576 = vlog2.pop %v575
      %v577 = vmul.f32 %v576, 0.6931472
      %v578 = vsub.f32 %v571, %v577
      %579 = vst [vmem:[#allocation13] sm:$0xff] %v578
    $region53: #{tpu_custom_call.1} parent=1 // pred_fallthru
      _
    // Predicated region
    $region54: #{tpu_custom_call.1} parent=1 // pred_check
      _
    $region55: #{tpu_custom_call.1} parent=1 // pred_check_branch
      %581 = sbr.rel (0) target = $region57
    $region56: #{tpu_custom_call.1} parent=1 // pred_region
      %s583 = ssub.s32 128, 128
      %584 = vsyncadd [#allocation9], %s583
      %s586 = sshll.u32 [#allocation13], 4
      %s587 = int_to_ptr.vmem [resolvable:$true] %s586
      %589 = dma.vmem_to_hbm [thread:$0]  %s587, 128, %s8, [#allocation9]
    $region57: #{tpu_custom_call.1} parent=1 // pred_fallthru
      _
    // Predicated region
    $region58: #{tpu_custom_call.1} parent=1 // pred_check
      _
    $region59: #{tpu_custom_call.1} parent=1 // pred_check_branch
      %591 = sbr.rel (0) target = $region61
    $region60: #{tpu_custom_call.1} parent=1 // pred_region
      %592 = dma.done [#allocation9], 128
    $region61: #{tpu_custom_call.1} parent=1 // pred_fallthru
      _
    %593 = vsyncpa [#allocation8], 1
    %594 = vsyncpa [#allocation11], 1
    %595 = vsyncpa [#allocation9], 1
  %596 = vsyncmov [#allocation6]
  %s597 = vpop.sfrf %596
  %p598 = scmp.eq.s32.totalorder %s597, 0
  %p599 = pneg %p598
  %601 = shalt.err (%p599)
  %s602 = scalar_lea.sflag [#allocation6], 1
  %603 = vsyncmov %s602
  %s604 = vpop.sfrf %603
  %p605 = scmp.eq.s32.totalorder %s604, 0
  %p606 = pneg %p605
  %608 = shalt.err (%p606)
  %s609 = scalar_lea.sflag [#allocation6], 2
  %610 = vsyncmov %s609
  %s611 = vpop.sfrf %610
  %p612 = scmp.eq.s32.totalorder %s611, 0
  %p613 = pneg %p612
  %615 = shalt.err (%p613)

</llo_original>
